<compile_context>
chip_gen: v7x
topology: tpu7x:2x2x1
jax: 0.10.0
libtpu: 0.0.40
codegen_flags: <defaults>
</compile_context>

<pallas_src>
import functools

import jax
import jax.numpy as jnp
import numpy as np
from jax.experimental import pallas as pl
from jax.experimental.pallas import tpu as pltpu


def _conv1d_same_im2col(h, w_ref, k, L):
    """'Same'-padded stride-1 conv1d as ONE im2col MXU matmul.

    h:     (Cin, L) f32 value (channels on sublanes, sequence on lanes)
    w_ref: (Cout, k*Cin) bf16 VMEM ref, tap-major blocks of Cin along the contraction axis
    """
    cin = h.shape[0]
    pad_left = (k - 1) // 2
    pad_right = k - 1 - pad_left

    parts = []
    if pad_left:
        parts.append(jnp.zeros((cin, pad_left), h.dtype))
    parts.append(h)
    if pad_right:
        parts.append(jnp.zeros((cin, pad_right), h.dtype))
    hp = jnp.concatenate(parts, axis=1) if len(parts) > 1 else h      # (Cin, L+k-1)

    # Stack the k shifted views along the channel (sublane) axis -> (k*Cin, L).
    cols = jnp.concatenate([hp[:, t:t + L] for t in range(k)], axis=0)
    return jnp.dot(w_ref[...], cols.astype(jnp.bfloat16),
                   preferred_element_type=jnp.float32)                # (Cout, L)


def _inception_kernel(x_ref, wb_ref, w1_ref, w2_ref, w3_ref, wr_ref, shift_ref,
                      o_ref, *, L, k1, k2, k3, tb):
    shift = shift_ref[...]                                            # (Co, 1) f32

    for b in range(tb):  # static unroll; tb is small
        x = x_ref[b]                                                  # (Cin, L) bf16

        # Bottleneck 1x1 conv == plain matmul in (C, L) layout.
        h = jnp.dot(wb_ref[...], x, preferred_element_type=jnp.float32)   # (Cb, L)

        # Three same-padded conv1d layers (kernel sizes k1 > k2 > k3), one matmul each.
        h = _conv1d_same_im2col(h, w1_ref, k1, L)                     # (Co, L)
        h = _conv1d_same_im2col(h, w2_ref, k2, L)
        h = _conv1d_same_im2col(h, w3_ref, k3, L)

        # Residual: 1x1 conv with BN scale folded into the weight, + bias, ReLU.
        r = jnp.dot(wr_ref[...], x, preferred_element_type=jnp.float32)   # (Co, L)
        r = jnp.maximum(r + shift, 0.0)

        o_ref[b] = (h + r).astype(o_ref.dtype)


def _pick_batch_block(n, max_block=8):
    """Largest divisor of n (<= max_block) that still leaves >= 2 grid steps when n >= 2,
    so both v7x TensorCores get work while batching rows per step on v5e/v6e."""
    target = min(max_block, max(1, n // 2))
    tb = 1
    for d in range(1, target + 1):
        if n % d == 0:
            tb = d
    return tb


def inception_block(x_ncl, params, *, kernel_size):
    """x_ncl: (N, C_in, L) float32, returns (N, out_channels, L) float32."""
    wb, w1, w2, w3, wr, gamma, beta, mean, var = params
    N, Cin, L = x_ncl.shape
    Cb = wb.shape[0]
    Co = w1.shape[0]
    k1, k2, k3 = (kernel_size // 2 ** i for i in range(3))
    eps = 1e-5

    tb = _pick_batch_block(N)
    grid = (N // tb,)

    # Weight prep (outside the kernel): im2col layout (Cout, k*Cin) with tap-major blocks
    # of Cin, BN folded into the residual 1x1 weight, matmul operands cast to bf16.
    wb_k = wb[:, :, 0].astype(jnp.bfloat16)                                     # (Cb, Cin)
    w1_k = jnp.transpose(w1, (0, 2, 1)).reshape(Co, k1 * Cb).astype(jnp.bfloat16)
    w2_k = jnp.transpose(w2, (0, 2, 1)).reshape(Co, k2 * Co).astype(jnp.bfloat16)
    w3_k = jnp.transpose(w3, (0, 2, 1)).reshape(Co, k3 * Co).astype(jnp.bfloat16)
    bn_scale = gamma / jnp.sqrt(var + eps)                                      # (Co,)
    wr_k = (wr[:, :, 0] * bn_scale[:, None]).astype(jnp.bfloat16)               # (Co, Cin)
    shift = (beta - mean * bn_scale).reshape(Co, 1).astype(jnp.float32)         # (Co, 1)

    x_bf = x_ncl.astype(jnp.bfloat16)   # halves x DMA bytes; accumulation stays f32

    kernel = functools.partial(_inception_kernel, L=L, k1=k1, k2=k2, k3=k3, tb=tb)

    out = pl.pallas_call(
        kernel,
        out_shape=jax.ShapeDtypeStruct((N, Co, L), jnp.float32),
        grid_spec=pltpu.PrefetchScalarGridSpec(
            num_scalar_prefetch=0,
            grid=grid,
            in_specs=[
                pl.BlockSpec((tb, Cin, L), lambda n: (n, 0, 0)),      # x (tb batch rows)
                pl.BlockSpec((Cb, Cin), lambda n: (0, 0)),            # bottleneck weight
                pl.BlockSpec((Co, k1 * Cb), lambda n: (0, 0)),        # conv1 im2col weight
                pl.BlockSpec((Co, k2 * Co), lambda n: (0, 0)),        # conv2 im2col weight
                pl.BlockSpec((Co, k3 * Co), lambda n: (0, 0)),        # conv3 im2col weight
                pl.BlockSpec((Co, Cin), lambda n: (0, 0)),            # residual weight (BN folded)
                pl.BlockSpec((Co, 1), lambda n: (0, 0)),              # BN shift (bias)
            ],
            out_specs=pl.BlockSpec((tb, Co, L), lambda n: (n, 0, 0)),
        ),
        compiler_params=pltpu.CompilerParams(
            dimension_semantics=("parallel",)),
    )(x_bf, wb_k, w1_k, w2_k, w3_k, wr_k, shift)

    return out


# ----------------------------- pure-JAX reference -----------------------------
def _conv1d_same_ref(x, w):
    """Mirrors Conv1dSamePadding (stride=1, dilation=1). x: (N,C,L), w: (O,I,K)."""
    k = w.shape[2]
    p = k - 1
    if p % 2 != 0:
        x = jnp.pad(x, ((0, 0), (0, 0), (0, 1)))
    return jax.lax.conv_general_dilated(
        x, w, window_strides=(1,), padding=[(p // 2, p // 2)],
        dimension_numbers=("NCH", "OIH", "NCH"))


def inception_block_ref(x, params, *, kernel_size):
    wb, w1, w2, w3, wr, gamma, beta, mean, var = params
    eps = 1e-5
    h = _conv1d_same_ref(x, wb)
    h = _conv1d_same_ref(h, w1)
    h = _conv1d_same_ref(h, w2)
    h = _conv1d_same_ref(h, w3)
    r = _conv1d_same_ref(x, wr)
    r = (r - mean[None, :, None]) / jnp.sqrt(var[None, :, None] + eps)
    r = r * gamma[None, :, None] + beta[None, :, None]
    r = jnp.maximum(r, 0.0)
    return h + r


if __name__ == "__main__":
    key = jax.random.PRNGKey(0)
    N, Cin, L = 2, 4, 16          # batch, input_size, sequence length
    Cb, Co = 8, 8                 # bottleneck_channels, out_channels
    kernel_size = 9               # -> per-layer kernel sizes [9, 4, 2]

    ks = jax.random.split(key, 10)
    x = jax.random.normal(ks[0], (N, Cin, L), jnp.float32)
    wb = 0.3 * jax.random.normal(ks[1], (Cb, Cin, 1), jnp.float32)
    w1 = 0.2 * jax.random.normal(ks[2], (Co, Cb, kernel_size), jnp.float32)
    w2 = 0.2 * jax.random.normal(ks[3], (Co, Co, kernel_size // 2), jnp.float32)
    w3 = 0.2 * jax.random.normal(ks[4], (Co, Co, kernel_size // 4), jnp.float32)
    wr = 0.3 * jax.random.normal(ks[5], (Co, Cin, 1), jnp.float32)
    gamma = 1.0 + 0.1 * jax.random.normal(ks[6], (Co,), jnp.float32)
    beta = 0.1 * jax.random.normal(ks[7], (Co,), jnp.float32)
    mean = 0.1 * jax.random.normal(ks[8], (Co,), jnp.float32)
    var = jnp.abs(jax.random.normal(ks[9], (Co,), jnp.float32)) + 0.5

    params = (wb, w1, w2, w3, wr, gamma, beta, mean, var)

    out = inception_block(x, params, kernel_size=kernel_size)
    jax.block_until_ready(out)

    ref = inception_block_ref(x, params, kernel_size=kernel_size)
    assert out.shape == (N, Co, L)
    # Looser tolerance than the f32 reference because the kernel uses bf16 MXU operands
    # (f32 accumulation); structural/semantic bugs would show up as O(1) errors.
    np.testing.assert_allclose(np.asarray(out), np.asarray(ref), rtol=5e-2, atol=5e-2)
    print("KERNEL_OK")
</pallas_src>

<mosaic_0001>
module attributes {stable_mosaic.version = 11 : i64} {
  func.func @_inception_kernel(%arg0: i32, %arg1: memref<1x4x16xbf16, #tpu.memory_space<vmem>>, %arg2: memref<8x4xbf16, #tpu.memory_space<vmem>>, %arg3: memref<8x72xbf16, #tpu.memory_space<vmem>>, %arg4: memref<8x32xbf16, #tpu.memory_space<vmem>>, %arg5: memref<8x16xbf16, #tpu.memory_space<vmem>>, %arg6: memref<8x4xbf16, #tpu.memory_space<vmem>>, %arg7: memref<8x1xf32, #tpu.memory_space<vmem>>, %arg8: memref<1x8x16xf32, #tpu.memory_space<vmem>>) attributes {dimension_semantics = [#tpu.dimension_semantics<parallel>], iteration_bounds = array<i64: 2>, scalar_prefetch = 0 : i64, scratch_operands = 0 : i64, tpu.core_type = #tpu.core_type<tc>, window_params = [{transform_indices = @transform_0, window_bounds = array<i64: 1, 4, 16>}, {pipeline_mode = #tpu.pipeline_mode<synchronous>, transform_indices = @transform_1, window_bounds = array<i64: 8, 4>}, {pipeline_mode = #tpu.pipeline_mode<synchronous>, transform_indices = @transform_2, window_bounds = array<i64: 8, 72>}, {pipeline_mode = #tpu.pipeline_mode<synchronous>, transform_indices = @transform_3, window_bounds = array<i64: 8, 32>}, {pipeline_mode = #tpu.pipeline_mode<synchronous>, transform_indices = @transform_4, window_bounds = array<i64: 8, 16>}, {pipeline_mode = #tpu.pipeline_mode<synchronous>, transform_indices = @transform_5, window_bounds = array<i64: 8, 4>}, {pipeline_mode = #tpu.pipeline_mode<synchronous>, transform_indices = @transform_6, window_bounds = array<i64: 8, 1>}, {transform_indices = @transform_7, window_bounds = array<i64: 1, 8, 16>}]} {
    %c0 = arith.constant 0 : index
    %c0_0 = arith.constant 0 : index
    %0 = vector.load %arg7[%c0, %c0_0] : memref<8x1xf32, #tpu.memory_space<vmem>>, vector<8x1xf32>
    %c0_1 = arith.constant 0 : index
    %c0_2 = arith.constant 0 : index
    %c0_3 = arith.constant 0 : index
    %1 = vector.load %arg1[%c0_1, %c0_2, %c0_3] : memref<1x4x16xbf16, #tpu.memory_space<vmem>>, vector<1x4x16xbf16>
    %2 = vector.shape_cast %1 : vector<1x4x16xbf16> to vector<4x16xbf16>
    %c0_4 = arith.constant 0 : index
    %c0_5 = arith.constant 0 : index
    %3 = vector.load %arg2[%c0_4, %c0_5] : memref<8x4xbf16, #tpu.memory_space<vmem>>, vector<8x4xbf16>
    %cst = arith.constant dense<0.000000e+00> : vector<8x16xf32>
    %4 = tpu.matmul %3, %2, %cst {dimension_numbers = #tpu.dot_dimension_numbers<[1], [0], [0], [1], [0, 0, 1, 1], [], []>} : vector<8x4xbf16>, vector<4x16xbf16>, vector<8x16xf32> -> vector<8x16xf32>
    %cst_6 = arith.constant 0.000000e+00 : f32
    %5 = vector.broadcast %cst_6 : f32 to vector<8x4xf32>
    %cst_7 = arith.constant 0.000000e+00 : f32
    %6 = vector.broadcast %cst_7 : f32 to vector<8x4xf32>
    %7 = tpu.concatenate %5, %4, %6 in 1 : vector<8x4xf32>, vector<8x16xf32>, vector<8x4xf32> -> vector<8x24xf32>
    %8 = vector.extract_strided_slice %7 {offsets = [0, 0], sizes = [8, 16], strides = [1, 1]} : vector<8x24xf32> to vector<8x16xf32>
    %9 = vector.extract_strided_slice %7 {offsets = [0, 1], sizes = [8, 16], strides = [1, 1]} : vector<8x24xf32> to vector<8x16xf32>
    %10 = vector.extract_strided_slice %7 {offsets = [0, 2], sizes = [8, 16], strides = [1, 1]} : vector<8x24xf32> to vector<8x16xf32>
    %11 = vector.extract_strided_slice %7 {offsets = [0, 3], sizes = [8, 16], strides = [1, 1]} : vector<8x24xf32> to vector<8x16xf32>
    %12 = vector.extract_strided_slice %7 {offsets = [0, 4], sizes = [8, 16], strides = [1, 1]} : vector<8x24xf32> to vector<8x16xf32>
    %13 = vector.extract_strided_slice %7 {offsets = [0, 5], sizes = [8, 16], strides = [1, 1]} : vector<8x24xf32> to vector<8x16xf32>
    %14 = vector.extract_strided_slice %7 {offsets = [0, 6], sizes = [8, 16], strides = [1, 1]} : vector<8x24xf32> to vector<8x16xf32>
    %15 = vector.extract_strided_slice %7 {offsets = [0, 7], sizes = [8, 16], strides = [1, 1]} : vector<8x24xf32> to vector<8x16xf32>
    %16 = vector.extract_strided_slice %7 {offsets = [0, 8], sizes = [8, 16], strides = [1, 1]} : vector<8x24xf32> to vector<8x16xf32>
    %17 = tpu.concatenate %8, %9, %10, %11, %12, %13, %14, %15, %16 in 0 : vector<8x16xf32>, vector<8x16xf32>, vector<8x16xf32>, vector<8x16xf32>, vector<8x16xf32>, vector<8x16xf32>, vector<8x16xf32>, vector<8x16xf32>, vector<8x16xf32> -> vector<72x16xf32>
    %c0_8 = arith.constant 0 : index
    %c0_9 = arith.constant 0 : index
    %18 = vector.load %arg3[%c0_8, %c0_9] : memref<8x72xbf16, #tpu.memory_space<vmem>>, vector<8x72xbf16>
    %19 = arith.truncf %17 : vector<72x16xf32> to vector<72x16xbf16>
    %cst_10 = arith.constant dense<0.000000e+00> : vector<8x16xf32>
    %20 = tpu.matmul %18, %19, %cst_10 {dimension_numbers = #tpu.dot_dimension_numbers<[1], [0], [0], [1], [0, 0, 1, 1], [], []>} : vector<8x72xbf16>, vector<72x16xbf16>, vector<8x16xf32> -> vector<8x16xf32>
    %cst_11 = arith.constant 0.000000e+00 : f32
    %21 = vector.broadcast %cst_11 : f32 to vector<8x1xf32>
    %cst_12 = arith.constant 0.000000e+00 : f32
    %22 = vector.broadcast %cst_12 : f32 to vector<8x2xf32>
    %23 = tpu.concatenate %21, %20, %22 in 1 : vector<8x1xf32>, vector<8x16xf32>, vector<8x2xf32> -> vector<8x19xf32>
    %24 = vector.extract_strided_slice %23 {offsets = [0, 0], sizes = [8, 16], strides = [1, 1]} : vector<8x19xf32> to vector<8x16xf32>
    %25 = vector.extract_strided_slice %23 {offsets = [0, 1], sizes = [8, 16], strides = [1, 1]} : vector<8x19xf32> to vector<8x16xf32>
    %26 = vector.extract_strided_slice %23 {offsets = [0, 2], sizes = [8, 16], strides = [1, 1]} : vector<8x19xf32> to vector<8x16xf32>
    %27 = vector.extract_strided_slice %23 {offsets = [0, 3], sizes = [8, 16], strides = [1, 1]} : vector<8x19xf32> to vector<8x16xf32>
    %28 = tpu.concatenate %24, %25, %26, %27 in 0 : vector<8x16xf32>, vector<8x16xf32>, vector<8x16xf32>, vector<8x16xf32> -> vector<32x16xf32>
    %c0_13 = arith.constant 0 : index
    %c0_14 = arith.constant 0 : index
    %29 = vector.load %arg4[%c0_13, %c0_14] : memref<8x32xbf16, #tpu.memory_space<vmem>>, vector<8x32xbf16>
    %30 = arith.truncf %28 : vector<32x16xf32> to vector<32x16xbf16>
    %cst_15 = arith.constant dense<0.000000e+00> : vector<8x16xf32>
    %31 = tpu.matmul %29, %30, %cst_15 {dimension_numbers = #tpu.dot_dimension_numbers<[1], [0], [0], [1], [0, 0, 1, 1], [], []>} : vector<8x32xbf16>, vector<32x16xbf16>, vector<8x16xf32> -> vector<8x16xf32>
    %cst_16 = arith.constant 0.000000e+00 : f32
    %32 = vector.broadcast %cst_16 : f32 to vector<8x1xf32>
    %33 = tpu.concatenate %31, %32 in 1 : vector<8x16xf32>, vector<8x1xf32> -> vector<8x17xf32>
    %34 = vector.extract_strided_slice %33 {offsets = [0, 0], sizes = [8, 16], strides = [1, 1]} : vector<8x17xf32> to vector<8x16xf32>
    %35 = vector.extract_strided_slice %33 {offsets = [0, 1], sizes = [8, 16], strides = [1, 1]} : vector<8x17xf32> to vector<8x16xf32>
    %36 = tpu.concatenate %34, %35 in 0 : vector<8x16xf32>, vector<8x16xf32> -> vector<16x16xf32>
    %c0_17 = arith.constant 0 : index
    %c0_18 = arith.constant 0 : index
    %37 = vector.load %arg5[%c0_17, %c0_18] : memref<8x16xbf16, #tpu.memory_space<vmem>>, vector<8x16xbf16>
    %38 = arith.truncf %36 : vector<16x16xf32> to vector<16x16xbf16>
    %cst_19 = arith.constant dense<0.000000e+00> : vector<8x16xf32>
    %39 = tpu.matmul %37, %38, %cst_19 {dimension_numbers = #tpu.dot_dimension_numbers<[1], [0], [0], [1], [0, 0, 1, 1], [], []>} : vector<8x16xbf16>, vector<16x16xbf16>, vector<8x16xf32> -> vector<8x16xf32>
    %c0_20 = arith.constant 0 : index
    %c0_21 = arith.constant 0 : index
    %40 = vector.load %arg6[%c0_20, %c0_21] : memref<8x4xbf16, #tpu.memory_space<vmem>>, vector<8x4xbf16>
    %cst_22 = arith.constant dense<0.000000e+00> : vector<8x16xf32>
    %41 = tpu.matmul %40, %2, %cst_22 {dimension_numbers = #tpu.dot_dimension_numbers<[1], [0], [0], [1], [0, 0, 1, 1], [], []>} : vector<8x4xbf16>, vector<4x16xbf16>, vector<8x16xf32> -> vector<8x16xf32>
    %42 = vector.broadcast %0 : vector<8x1xf32> to vector<8x16xf32>
    %43 = arith.addf %41, %42 : vector<8x16xf32>
    %cst_23 = arith.constant 0.000000e+00 : f32
    %44 = vector.broadcast %cst_23 : f32 to vector<8x16xf32>
    %45 = arith.maximumf %43, %44 : vector<8x16xf32>
    %46 = arith.addf %39, %45 : vector<8x16xf32>
    %c0_24 = arith.constant 0 : index
    %c0_25 = arith.constant 0 : index
    %c0_26 = arith.constant 0 : index
    %47 = vector.load %arg8[%c0_24, %c0_25, %c0_26] : memref<1x8x16xf32, #tpu.memory_space<vmem>>, vector<1x8x16xf32>
    %48 = vector.shape_cast %47 : vector<1x8x16xf32> to vector<8x16xf32>
    %49 = vector.shape_cast %46 : vector<8x16xf32> to vector<1x8x16xf32>
    tpu.vector_store %arg8[%c0_24, %c0_25, %c0_26], %49 {strides = array<i32>} : memref<1x8x16xf32, #tpu.memory_space<vmem>>, vector<1x8x16xf32>,
    return
  }
  func.func @transform_0(%arg0: i32) -> (i32, i32, i32) {
    %c0_i32 = arith.constant 0 : i32
    %c0_i32_0 = arith.constant 0 : i32
    %c0_i32_1 = arith.constant 0 : i32
    return %arg0, %c0_i32, %c0_i32_0 : i32, i32, i32
  }
  func.func @transform_1(%arg0: i32) -> (i32, i32) {
    %c0_i32 = arith.constant 0 : i32
    %c0_i32_0 = arith.constant 0 : i32
    %c0_i32_1 = arith.constant 0 : i32
    return %c0_i32, %c0_i32_0 : i32, i32
  }
  func.func @transform_2(%arg0: i32) -> (i32, i32) {
    %c0_i32 = arith.constant 0 : i32
    %c0_i32_0 = arith.constant 0 : i32
    %c0_i32_1 = arith.constant 0 : i32
    return %c0_i32, %c0_i32_0 : i32, i32
  }
  func.func @transform_3(%arg0: i32) -> (i32, i32) {
    %c0_i32 = arith.constant 0 : i32
    %c0_i32_0 = arith.constant 0 : i32
    %c0_i32_1 = arith.constant 0 : i32
    return %c0_i32, %c0_i32_0 : i32, i32
  }
  func.func @transform_4(%arg0: i32) -> (i32, i32) {
    %c0_i32 = arith.constant 0 : i32
    %c0_i32_0 = arith.constant 0 : i32
    %c0_i32_1 = arith.constant 0 : i32
    return %c0_i32, %c0_i32_0 : i32, i32
  }
  func.func @transform_5(%arg0: i32) -> (i32, i32) {
    %c0_i32 = arith.constant 0 : i32
    %c0_i32_0 = arith.constant 0 : i32
    %c0_i32_1 = arith.constant 0 : i32
    return %c0_i32, %c0_i32_0 : i32, i32
  }
  func.func @transform_6(%arg0: i32) -> (i32, i32) {
    %c0_i32 = arith.constant 0 : i32
    %c0_i32_0 = arith.constant 0 : i32
    %c0_i32_1 = arith.constant 0 : i32
    return %c0_i32, %c0_i32_0 : i32, i32
  }
  func.func @transform_7(%arg0: i32) -> (i32, i32, i32) {
    %c0_i32 = arith.constant 0 : i32
    %c0_i32_0 = arith.constant 0 : i32
    %c0_i32_1 = arith.constant 0 : i32
    return %arg0, %c0_i32, %c0_i32_0 : i32, i32, i32
  }
}

</mosaic_0001>

<llo_original>
// kernel: tpu_custom_call.1
$region0: #{tpu_custom_call.1}
  #allocation0 [shape = 'u32[]', space=smem, size = 0x4, offset = 0x4, fixed_abs, tag = 'smem constant byte address 0x4 - core index']
  #allocation1 [shape = 'u32[144,128]{1,0:T(1,128)}', space=vmem, size = 0x12000, scoped, tag = 'internal scratch']
  %s0 = inlined_call_operand.vmem [shape: bf16[2,4,16], index: 0, kind: input, shape index: {}]
  %s1 = inlined_call_operand.vmem [shape: bf16[8,4], index: 1, kind: input, shape index: {}]
  %s2 = inlined_call_operand.vmem [shape: bf16[8,72], index: 2, kind: input, shape index: {}]
  %s3 = inlined_call_operand.vmem [shape: bf16[8,32], index: 3, kind: input, shape index: {}]
  %s4 = inlined_call_operand.vmem [shape: bf16[8,16], index: 4, kind: input, shape index: {}]
  %s5 = inlined_call_operand.vmem [shape: bf16[8,4], index: 5, kind: input, shape index: {}]
  %s6 = inlined_call_operand.vmem [shape: f32[8,1], index: 6, kind: input, shape index: {}]
  %s7 = inlined_call_operand.hbm [shape: f32[2,8,16], index: 7, kind: output, shape index: {}]
  %s8 = sld [smem:[#allocation0]]
  $region61: #{tpu_custom_call.1} parent=0
    _
  %s10 = ssub.s32 1, %s8
  %s11 = scalar_select 0, %s10, %s8
  $region1: #{tpu_custom_call.1} parent=0
    #allocation2 [shape = 'u8[8192]{0}', space=vmem, size = 0x2000, scoped, tag = 'output window, operand 0']
    #allocation3 [shape = 's32[2]{0}', space=sflag, size = 0x8, scoped, tag = 'scoped memory for tpu_custom_call.1']
    %12 = vsyncpa [#allocation3], 0
    %s13 = scalar_lea.sflag [#allocation3], 1
    %14 = vsyncpa %s13, 0
    loop: start=0, step=1, limit=4
    $region2: #{tpu_custom_call.1} parent=1 // loop_pre_header
      _
    $region3: #{tpu_custom_call.1} parent=1 // loop_header
      %s16 = sphi 0, %s20
      %p17 = scmp.ge.s32.totalorder %s16, 4
      %s26 = sphi 0, %s28
      %s29 = sphi 0, %s26
      %s30 = sphi 0, %s29
      %s46 = sphi 0, %s30
      %s50 = sphi 0, %s50
      %s52 = sphi 0, %s50
      %s53 = sphi 0, %s52
      %s67 = sphi 0, %s53
      %s71 = sphi 0, %s71
      %s73 = sphi 0, %s71
      %s74 = sphi 0, %s73
      %s88 = sphi 0, %s74
      %s92 = sphi 0, %s92
      %s94 = sphi 0, %s92
      %s95 = sphi 0, %s94
      %s109 = sphi 0, %s95
      %s113 = sphi 0, %s113
      %s115 = sphi 0, %s113
      %s116 = sphi 0, %s115
      %s130 = sphi 0, %s116
      %s134 = sphi 0, %s134
      %s136 = sphi 0, %s134
      %s137 = sphi 0, %s136
      %s151 = sphi 0, %s137
      %s155 = sphi 0, %s155
      %s157 = sphi 0, %s155
      %s158 = sphi 0, %s157
      %s172 = sphi 0, %s158
      %s178 = sphi 0, %s180
      %s181 = sphi 0, %s178
      %s182 = sphi 0, %s181
      %s198 = sphi 0, %s182
    $region4: #{tpu_custom_call.1} parent=1 // loop_header_branch
      %19 = sbr.rel (%p17) target = $region8
    $region5: #{tpu_custom_call.1} parent=1 // loop_body
      %s21 = ssub.s32 %s16, 1
      %s22 = ssub.s32 %s16, 2
      %s23 = sadd.s32 %s16, 1
      %s24 = ssub.s32 %s16, %s23
      %p25 = scmp.eq.s32.totalorder %s24, 0
      %s27 = sadd.s32 %s26, 1
      %s28 = scalar_select %p25, %s26, %s27
      %p31 = pneg %p25
      %p32 = scmp.eq.s32.totalorder %s16, 1
      %p33 = por %p31, %p32
      %p34 = scmp.ne.s32.totalorder %s26, %s29
      %p35 = scmp.eq.s32.totalorder %s16, 0
      %p36 = por %p34, %p35
      %p37 = scmp.ne.s32.totalorder %s26, %s29
      %p38 = scmp.eq.s32.totalorder %s21, 1
      %p39 = por %p37, %p38
      %p40 = scmp.ne.s32.totalorder %s29, %s30
      %p41 = scmp.eq.s32.totalorder %s21, 0
      %p42 = por %p40, %p41
      %p43 = scmp.ne.s32.totalorder %s29, %s30
      %p44 = scmp.eq.s32.totalorder %s22, 1
      %p45 = por %p43, %p44
      %p47 = scmp.ne.s32.totalorder %s30, %s46
      %p48 = scmp.eq.s32.totalorder %s22, 0
      %p49 = por %p47, %p48
      %s51 = sadd.s32 %s50, 1
      %p54 = scmp.eq.s32.totalorder %s16, 1
      %p55 = scmp.ne.s32.totalorder %s50, %s52
      %p56 = scmp.eq.s32.totalorder %s16, 0
      %p57 = por %p55, %p56
      %p58 = scmp.ne.s32.totalorder %s50, %s52
      %p59 = scmp.eq.s32.totalorder %s21, 1
      %p60 = por %p58, %p59
      %p61 = scmp.ne.s32.totalorder %s52, %s53
      %p62 = scmp.eq.s32.totalorder %s21, 0
      %p63 = por %p61, %p62
      %p64 = scmp.ne.s32.totalorder %s52, %s53
      %p65 = scmp.eq.s32.totalorder %s22, 1
      %p66 = por %p64, %p65
      %p68 = scmp.ne.s32.totalorder %s53, %s67
      %p69 = scmp.eq.s32.totalorder %s22, 0
      %p70 = por %p68, %p69
      %s72 = sadd.s32 %s71, 1
      %p75 = scmp.eq.s32.totalorder %s16, 1
      %p76 = scmp.ne.s32.totalorder %s71, %s73
      %p77 = scmp.eq.s32.totalorder %s16, 0
      %p78 = por %p76, %p77
      %p79 = scmp.ne.s32.totalorder %s71, %s73
      %p80 = scmp.eq.s32.totalorder %s21, 1
      %p81 = por %p79, %p80
      %p82 = scmp.ne.s32.totalorder %s73, %s74
      %p83 = scmp.eq.s32.totalorder %s21, 0
      %p84 = por %p82, %p83
      %p85 = scmp.ne.s32.totalorder %s73, %s74
      %p86 = scmp.eq.s32.totalorder %s22, 1
      %p87 = por %p85, %p86
      %p89 = scmp.ne.s32.totalorder %s74, %s88
      %p90 = scmp.eq.s32.totalorder %s22, 0
      %p91 = por %p89, %p90
      %s93 = sadd.s32 %s92, 1
      %p96 = scmp.eq.s32.totalorder %s16, 1
      %p97 = scmp.ne.s32.totalorder %s92, %s94
      %p98 = scmp.eq.s32.totalorder %s16, 0
      %p99 = por %p97, %p98
      %p100 = scmp.ne.s32.totalorder %s92, %s94
      %p101 = scmp.eq.s32.totalorder %s21, 1
      %p102 = por %p100, %p101
      %p103 = scmp.ne.s32.totalorder %s94, %s95
      %p104 = scmp.eq.s32.totalorder %s21, 0
      %p105 = por %p103, %p104
      %p106 = scmp.ne.s32.totalorder %s94, %s95
      %p107 = scmp.eq.s32.totalorder %s22, 1
      %p108 = por %p106, %p107
      %p110 = scmp.ne.s32.totalorder %s95, %s109
      %p111 = scmp.eq.s32.totalorder %s22, 0
      %p112 = por %p110, %p111
      %s114 = sadd.s32 %s113, 1
      %p117 = scmp.eq.s32.totalorder %s16, 1
      %p118 = scmp.ne.s32.totalorder %s113, %s115
      %p119 = scmp.eq.s32.totalorder %s16, 0
      %p120 = por %p118, %p119
      %p121 = scmp.ne.s32.totalorder %s113, %s115
      %p122 = scmp.eq.s32.totalorder %s21, 1
      %p123 = por %p121, %p122
      %p124 = scmp.ne.s32.totalorder %s115, %s116
      %p125 = scmp.eq.s32.totalorder %s21, 0
      %p126 = por %p124, %p125
      %p127 = scmp.ne.s32.totalorder %s115, %s116
      %p128 = scmp.eq.s32.totalorder %s22, 1
      %p129 = por %p127, %p128
      %p131 = scmp.ne.s32.totalorder %s116, %s130
      %p132 = scmp.eq.s32.totalorder %s22, 0
      %p133 = por %p131, %p132
      %s135 = sadd.s32 %s134, 1
      %p138 = scmp.eq.s32.totalorder %s16, 1
      %p139 = scmp.ne.s32.totalorder %s134, %s136
      %p140 = scmp.eq.s32.totalorder %s16, 0
      %p141 = por %p139, %p140
      %p142 = scmp.ne.s32.totalorder %s134, %s136
      %p143 = scmp.eq.s32.totalorder %s21, 1
      %p144 = por %p142, %p143
      %p145 = scmp.ne.s32.totalorder %s136, %s137
      %p146 = scmp.eq.s32.totalorder %s21, 0
      %p147 = por %p145, %p146
      %p148 = scmp.ne.s32.totalorder %s136, %s137
      %p149 = scmp.eq.s32.totalorder %s22, 1
      %p150 = por %p148, %p149
      %p152 = scmp.ne.s32.totalorder %s137, %s151
      %p153 = scmp.eq.s32.totalorder %s22, 0
      %p154 = por %p152, %p153
      %s156 = sadd.s32 %s155, 1
      %p159 = scmp.eq.s32.totalorder %s16, 1
      %p160 = scmp.ne.s32.totalorder %s155, %s157
      %p161 = scmp.eq.s32.totalorder %s16, 0
      %p162 = por %p160, %p161
      %p163 = scmp.ne.s32.totalorder %s155, %s157
      %p164 = scmp.eq.s32.totalorder %s21, 1
      %p165 = por %p163, %p164
      %p166 = scmp.ne.s32.totalorder %s157, %s158
      %p167 = scmp.eq.s32.totalorder %s21, 0
      %p168 = por %p166, %p167
      %p169 = scmp.ne.s32.totalorder %s157, %s158
      %p170 = scmp.eq.s32.totalorder %s22, 1
      %p171 = por %p169, %p170
      %p173 = scmp.ne.s32.totalorder %s158, %s172
      %p174 = scmp.eq.s32.totalorder %s22, 0
      %p175 = por %p173, %p174
      %s176 = ssub.s32 %s16, %s23
      %p177 = scmp.eq.s32.totalorder %s176, 0
      %s179 = sadd.s32 %s178, 1
      %s180 = scalar_select %p177, %s178, %s179
      %p183 = pneg %p177
      %p184 = scmp.eq.s32.totalorder %s16, 1
      %p185 = por %p183, %p184
      %p186 = scmp.ne.s32.totalorder %s178, %s181
      %p187 = scmp.eq.s32.totalorder %s16, 0
      %p188 = por %p186, %p187
      %p189 = scmp.ne.s32.totalorder %s178, %s181
      %p190 = scmp.eq.s32.totalorder %s21, 1
      %p191 = por %p189, %p190
      %p192 = scmp.ne.s32.totalorder %s181, %s182
      %p193 = scmp.eq.s32.totalorder %s21, 0
      %p194 = por %p192, %p193
      %p195 = scmp.ne.s32.totalorder %s181, %s182
      %p196 = scmp.eq.s32.totalorder %s22, 1
      %p197 = por %p195, %p196
      %p199 = scmp.ne.s32.totalorder %s182, %s198
      %p200 = scmp.eq.s32.totalorder %s22, 0
      %p201 = por %p199, %p200
      %p202 = scmp.le.s32.totalorder 1, %s16
      %p203 = scmp.lt.s32.totalorder %s16, 3
      %p204 = pnand %p202, %p203
      %p205 = pneg %p204
      // Predicated region
      $region9: #{tpu_custom_call.1} parent=5 // pred_check
        _
      $region10: #{tpu_custom_call.1} parent=5 // pred_check_branch
        %207 = sbr.rel (%p204) target = $region12
      $region11: #{tpu_custom_call.1} parent=5 // pred_region
        %s208 = ssub.s32 %s16, 1
        // Predicated region
        $region13: #{tpu_custom_call.1} parent=11 // pred_check
          %p209 = pneg %p63
        $region14: #{tpu_custom_call.1} parent=11 // pred_check_branch
          %211 = sbr.rel (%p209) target = $region16
        $region15: #{tpu_custom_call.1} parent=11 // pred_region
          _
        $region16: #{tpu_custom_call.1} parent=11 // pred_fallthru
          _
        // Predicated region
        $region17: #{tpu_custom_call.1} parent=11 // pred_check
          %p212 = pneg %p84
        $region18: #{tpu_custom_call.1} parent=11 // pred_check_branch
          %214 = sbr.rel (%p212) target = $region20
        $region19: #{tpu_custom_call.1} parent=11 // pred_region
          _
        $region20: #{tpu_custom_call.1} parent=11 // pred_fallthru
          _
        // Predicated region
        $region21: #{tpu_custom_call.1} parent=11 // pred_check
          %p215 = pneg %p105
        $region22: #{tpu_custom_call.1} parent=11 // pred_check_branch
          %217 = sbr.rel (%p215) target = $region24
        $region23: #{tpu_custom_call.1} parent=11 // pred_region
          _
        $region24: #{tpu_custom_call.1} parent=11 // pred_fallthru
          _
        // Predicated region
        $region25: #{tpu_custom_call.1} parent=11 // pred_check
          %p218 = pneg %p126
        $region26: #{tpu_custom_call.1} parent=11 // pred_check_branch
          %220 = sbr.rel (%p218) target = $region28
        $region27: #{tpu_custom_call.1} parent=11 // pred_region
          _
        $region28: #{tpu_custom_call.1} parent=11 // pred_fallthru
          _
        // Predicated region
        $region29: #{tpu_custom_call.1} parent=11 // pred_check
          %p221 = pneg %p147
        $region30: #{tpu_custom_call.1} parent=11 // pred_check_branch
          %223 = sbr.rel (%p221) target = $region32
        $region31: #{tpu_custom_call.1} parent=11 // pred_region
          _
        $region32: #{tpu_custom_call.1} parent=11 // pred_fallthru
          _
        // Predicated region
        $region33: #{tpu_custom_call.1} parent=11 // pred_check
          %p224 = pneg %p168
        $region34: #{tpu_custom_call.1} parent=11 // pred_check_branch
          %226 = sbr.rel (%p224) target = $region36
        $region35: #{tpu_custom_call.1} parent=11 // pred_region
          _
        $region36: #{tpu_custom_call.1} parent=11 // pred_fallthru
          _
      $region12: #{tpu_custom_call.1} parent=5 // pred_fallthru
        _
      %p227 = scmp.lt.s32.totalorder %s16, 2
      // Predicated region
      $region37: #{tpu_custom_call.1} parent=5 // pred_check
        %p228 = pneg %p227
      $region38: #{tpu_custom_call.1} parent=5 // pred_check_branch
        %230 = sbr.rel (%p228) target = $region40
      $region39: #{tpu_custom_call.1} parent=5 // pred_region
        // Predicated region
        $region41: #{tpu_custom_call.1} parent=39 // pred_check
          %p231 = pneg %p36
        $region42: #{tpu_custom_call.1} parent=39 // pred_check_branch
          %233 = sbr.rel (%p231) target = $region44
        $region43: #{tpu_custom_call.1} parent=39 // pred_region
          %p234 = scmp.lt.s32.totalorder %s16, 1
          %s235 = scalar_select %p234, %s16, 1
          %s236 = smul.addr %s235, 2
          %s237 = scalar_lea.vmem %s0, %s236
        $region44: #{tpu_custom_call.1} parent=39 // pred_fallthru
          _
      $region40: #{tpu_custom_call.1} parent=5 // pred_fallthru
        _
      %p238 = scmp.le.s32.totalorder 1, %s16
      %p239 = scmp.lt.s32.totalorder %s16, 3
      %p240 = pnand %p238, %p239
      %p241 = pneg %p240
      // Predicated region
      $region45: #{tpu_custom_call.1} parent=5 // pred_check
        _
      $region46: #{tpu_custom_call.1} parent=5 // pred_check_branch
        %243 = sbr.rel (%p240) target = $region48
      $region47: #{tpu_custom_call.1} parent=5 // pred_region
        %s244 = ssub.s32 %s16, 1
        %p245 = scmp.lt.s32.totalorder %s21, 1
        %s246 = scalar_select %p245, %s21, 1
        %s247 = smul.addr %s246, 2
        %s248 = scalar_lea.vmem %s0, %s247
        %p249 = pneg %p42
        %p250 = pneg %p39
        %p251 = pneg %p63
        %p252 = pneg %p60
        %p253 = pneg %p84
        %p254 = pneg %p81
        %p255 = pneg %p105
        %p256 = pneg %p102
        %p257 = pneg %p126
        %p258 = pneg %p123
        %p259 = pneg %p147
        %p260 = pneg %p144
        %p261 = pneg %p168
        %p262 = pneg %p165
        %p263 = pneg %p194
        %p264 = pneg %p191
        %s265 = sand.u32 %s181, 1
        %s266 = scalar_lea.sflag [#allocation3], %s265
        %s267 = sand.u32 %s181, 1
        %s268 = smul.addr %s267, 8
        %s269 = scalar_lea.vmem [#allocation2], %s268
        %p270 = scmp.lt.s32.totalorder %s21, 1
        %s271 = scalar_select %p270, %s21, 1
        %s272 = smul.addr %s271, 2
        %s273 = scalar_lea.vmem %s0, %s272
        %v275 = vld [vmem:[%s6] sm:$0xff]
        %v276 = vld [vmem:[%s273] sm:$0x3]
        %v277 = vld [vmem:[%s1] sm:$0xf]
        %vm278 = vcmask 31744
        %v280 = vsel %vm278, %v277, 0
        %vm282 = vcmask 1041408
        %v284 = vsel %vm282, %v276, 0
        %286 = vmatprep.subr.bf16.mxu0 0
        %287 = vmatpush1.bf16.msra.mxu0 %v284
        %288 = vmatprep.subr.bf16.mxu0 0
        %289 = vmatpush1.bf16.msra.mxu0 0
        %290 = vmatprep.subr.bf16.mxu0 0
        %291 = vmatpush1.bf16.msra.mxu0 0
        %292 = vmatprep.subr.bf16.mxu0 0
        %293 = vmatpush1.bf16.msra.mxu0 0
        %294 = vmatprep.subr.bf16.mxu0 0
        %295 = vmatpush1.bf16.msra.mxu0 0
        %296 = vmatprep.subr.bf16.mxu0 0
        %297 = vmatpush1.bf16.msra.mxu0 0
        %298 = vmatprep.subr.bf16.mxu0 0
        %299 = vmatpush1.bf16.msra.mxu0 0
        %300 = vmatprep.subr.bf16.mxu0 0
        %301 = vmatpush1.bf16.msra.mxu0 0
        %302 = vmatprep.subr.bf16.mxu0 0
        %303 = vmatpush1.bf16.msra.mxu0 0
        %304 = vmatprep.subr.bf16.mxu0 0
        %305 = vmatpush1.bf16.msra.mxu0 0
        %306 = vmatprep.subr.bf16.mxu0 0
        %307 = vmatpush1.bf16.msra.mxu0 0
        %308 = vmatprep.subr.bf16.mxu0 0
        %309 = vmatpush1.bf16.msra.mxu0 0
        %310 = vmatprep.subr.bf16.mxu0 0
        %311 = vmatpush1.bf16.msra.mxu0 0
        %312 = vmatprep.subr.bf16.mxu0 0
        %313 = vmatpush1.bf16.msra.mxu0 0
        %314 = vmatprep.subr.bf16.mxu0 0
        %315 = vmatpush1.bf16.msra.mxu0 0
        %316 = vmatprep.subr.bf16.mxu0 0
        %317 = vmatpush1.bf16.msra.mxu0 0
        %318 = vmatprep.mubr.bf16.mxu0 0
        %319 = vmatmul.mubr.bf16.gmra.mrb[0].mxu0 %v280
        %v320 = vpop.f32.mrb[0].mxu0
        %v321 = vadd.f32 0.0, %v320
        %v322 = vpop.f32.mrb[0].mxu0
        %v323 = vpop.f32.mrb[0].mxu0
        %v324 = vpop.f32.mrb[0].mxu0
        %325 = vdwg.mxu0
        %327 = vrot.lane.b32.xlu0 %v321, 4
        %v328 = vpop.permute.xlu0 %327
        %v330 = vsel %vm278, 0.0, %v328
        %vm331 = vcmask 162816
        %v332 = vsel %vm331, %v330, 0.0
        %334 = vrot.lane.b32.xlu0 %v332, 127
        %v335 = vpop.permute.xlu0 %334
        %337 = vrot.lane.b32.xlu0 %v332, 126
        %v338 = vpop.permute.xlu0 %337
        %340 = vrot.lane.b32.xlu0 %v332, 125
        %v341 = vpop.permute.xlu0 %340
        %343 = vrot.lane.b32.xlu0 %v332, 124
        %v344 = vpop.permute.xlu0 %343
        %346 = vrot.lane.b32.xlu0 %v332, 123
        %v347 = vpop.permute.xlu0 %346
        %349 = vrot.lane.b32.xlu0 %v332, 122
        %v350 = vpop.permute.xlu0 %349
        %352 = vrot.lane.b32.xlu0 %v332, 121
        %v353 = vpop.permute.xlu0 %352
        %355 = vrot.lane.b32.xlu0 %v332, 120
        %v356 = vpop.permute.xlu0 %355
        %v358 = vld [vmem:[%s2] sm:$0xf]
        %v359 = vpack.c.bf16 %v335, %v332
        %v360 = vpack.c.bf16 %v341, %v338
        %v361 = vpack.c.bf16 %v347, %v344
        %v362 = vpack.c.bf16 %v353, %v350
        %v363 = vpack.c.bf16 %v356, %v356
        %vm364 = vcmask 588800
        %v366 = vsel %vm364, %v358, 0
        %vm368 = vcmask 1043456
        %v370 = vsel %vm368, %v363, 0
        %372 = vmatprep.subr.bf16.mxu0 0
        %373 = vmatpush1.bf16.msra.mxu0 %v359
        %374 = vmatprep.subr.bf16.mxu0 0
        %375 = vmatpush1.bf16.msra.mxu0 %v360
        %376 = vmatprep.subr.bf16.mxu0 0
        %377 = vmatpush1.bf16.msra.mxu0 %v361
        %378 = vmatprep.subr.bf16.mxu0 0
        %379 = vmatpush1.bf16.msra.mxu0 %v362
        %380 = vmatprep.subr.bf16.mxu0 0
        %381 = vmatpush1.bf16.msra.mxu0 %v370
        %382 = vmatprep.subr.bf16.mxu0 0
        %383 = vmatpush1.bf16.msra.mxu0 0
        %384 = vmatprep.subr.bf16.mxu0 0
        %385 = vmatpush1.bf16.msra.mxu0 0
        %386 = vmatprep.subr.bf16.mxu0 0
        %387 = vmatpush1.bf16.msra.mxu0 0
        %388 = vmatprep.subr.bf16.mxu0 0
        %389 = vmatpush1.bf16.msra.mxu0 0
        %390 = vmatprep.subr.bf16.mxu0 0
        %391 = vmatpush1.bf16.msra.mxu0 0
        %392 = vmatprep.subr.bf16.mxu0 0
        %393 = vmatpush1.bf16.msra.mxu0 0
        %394 = vmatprep.subr.bf16.mxu0 0
        %395 = vmatpush1.bf16.msra.mxu0 0
        %396 = vmatprep.subr.bf16.mxu0 0
        %397 = vmatpush1.bf16.msra.mxu0 0
        %398 = vmatprep.subr.bf16.mxu0 0
        %399 = vmatpush1.bf16.msra.mxu0 0
        %400 = vmatprep.subr.bf16.mxu0 0
        %401 = vmatpush1.bf16.msra.mxu0 0
        %402 = vmatprep.subr.bf16.mxu0 0
        %403 = vmatpush1.bf16.msra.mxu0 0
        %404 = vmatprep.mubr.bf16.mxu0 0
        %405 = vmatmul.mubr.bf16.gmra.mrb[0].mxu0 %v366
        %v406 = vpop.f32.mrb[0].mxu0
        %v407 = vadd.f32 0.0, %v406
        %v408 = vpop.f32.mrb[0].mxu0
        %v409 = vpop.f32.mrb[0].mxu0
        %v410 = vpop.f32.mrb[0].mxu0
        %411 = vdwg.mxu0
        %413 = vrot.lane.b32.xlu0 %v407, 1
        %v414 = vpop.permute.xlu0 %413
        %vm416 = vcmask 7168
        %v417 = vsel %vm416, 0.0, %v414
        %vm418 = vcmask 138240
        %v419 = vsel %vm418, %v417, 0.0
        %421 = vrot.lane.b32.xlu0 %v419, 127
        %v422 = vpop.permute.xlu0 %421
        %424 = vrot.lane.b32.xlu0 %v419, 126
        %v425 = vpop.permute.xlu0 %424
        %427 = vrot.lane.b32.xlu0 %v419, 125
        %v428 = vpop.permute.xlu0 %427
        %v430 = vld [vmem:[%s3] sm:$0xf]
        %v431 = vpack.c.bf16 %v422, %v419
        %v432 = vpack.c.bf16 %v428, %v425
        %vm433 = vcmask 261120
        %v435 = vsel %vm433, %v430, 0
        %437 = vmatprep.subr.bf16.mxu0 0
        %438 = vmatpush1.bf16.msra.mxu0 %v431
        %439 = vmatprep.subr.bf16.mxu0 0
        %440 = vmatpush1.bf16.msra.mxu0 %v432
        %441 = vmatprep.subr.bf16.mxu0 0
        %442 = vmatpush1.bf16.msra.mxu0 0
        %443 = vmatprep.subr.bf16.mxu0 0
        %444 = vmatpush1.bf16.msra.mxu0 0
        %445 = vmatprep.subr.bf16.mxu0 0
        %446 = vmatpush1.bf16.msra.mxu0 0
        %447 = vmatprep.subr.bf16.mxu0 0
        %448 = vmatpush1.bf16.msra.mxu0 0
        %449 = vmatprep.subr.bf16.mxu0 0
        %450 = vmatpush1.bf16.msra.mxu0 0
        %451 = vmatprep.subr.bf16.mxu0 0
        %452 = vmatpush1.bf16.msra.mxu0 0
        %453 = vmatprep.subr.bf16.mxu0 0
        %454 = vmatpush1.bf16.msra.mxu0 0
        %455 = vmatprep.subr.bf16.mxu0 0
        %456 = vmatpush1.bf16.msra.mxu0 0
        %457 = vmatprep.subr.bf16.mxu0 0
        %458 = vmatpush1.bf16.msra.mxu0 0
        %459 = vmatprep.subr.bf16.mxu0 0
        %460 = vmatpush1.bf16.msra.mxu0 0
        %461 = vmatprep.subr.bf16.mxu0 0
        %462 = vmatpush1.bf16.msra.mxu0 0
        %463 = vmatprep.subr.bf16.mxu0 0
        %464 = vmatpush1.bf16.msra.mxu0 0
        %465 = vmatprep.subr.bf16.mxu0 0
        %466 = vmatpush1.bf16.msra.mxu0 0
        %467 = vmatprep.subr.bf16.mxu0 0
        %468 = vmatpush1.bf16.msra.mxu0 0
        %469 = vmatprep.mubr.bf16.mxu0 0
        %470 = vmatmul.mubr.bf16.gmra.mrb[0].mxu0 %v435
        %v471 = vpop.f32.mrb[0].mxu0
        %v472 = vadd.f32 0.0, %v471
        %v473 = vpop.f32.mrb[0].mxu0
        %v474 = vpop.f32.mrb[0].mxu0
        %v475 = vpop.f32.mrb[0].mxu0
        %476 = vdwg.mxu0
        %vm477 = vcmask 130048
        %v478 = vsel %vm477, %v472, 0.0
        %480 = vrot.lane.b32.xlu0 %v478, 127
        %v481 = vpop.permute.xlu0 %480
        %v483 = vld [vmem:[%s4] sm:$0xf]
        %v484 = vpack.c.bf16 %v481, %v478
        %v485 = vld [vmem:[%s5] sm:$0xf]
        %487 = vset.pattern.permute.xlu0 0
        %488 = vperm.xlu0 %487, %v275
        %v489 = vpop.permute.xlu0 %488
        %v492 = vsel %vm278, %v485, 0
        %494 = vmatprep.subr.bf16.mxu0 0
        %495 = vmatpush1.bf16.msra.mxu0 %v284
        %496 = vmatprep.subr.bf16.mxu0 0
        %497 = vmatpush1.bf16.msra.mxu0 0
        %498 = vmatprep.subr.bf16.mxu0 0
        %499 = vmatpush1.bf16.msra.mxu0 0
        %500 = vmatprep.subr.bf16.mxu0 0
        %501 = vmatpush1.bf16.msra.mxu0 0
        %502 = vmatprep.subr.bf16.mxu0 0
        %503 = vmatpush1.bf16.msra.mxu0 0
        %504 = vmatprep.subr.bf16.mxu0 0
        %505 = vmatpush1.bf16.msra.mxu0 0
        %506 = vmatprep.subr.bf16.mxu0 0
        %507 = vmatpush1.bf16.msra.mxu0 0
        %508 = vmatprep.subr.bf16.mxu0 0
        %509 = vmatpush1.bf16.msra.mxu0 0
        %510 = vmatprep.subr.bf16.mxu0 0
        %511 = vmatpush1.bf16.msra.mxu0 0
        %512 = vmatprep.subr.bf16.mxu0 0
        %513 = vmatpush1.bf16.msra.mxu0 0
        %514 = vmatprep.subr.bf16.mxu0 0
        %515 = vmatpush1.bf16.msra.mxu0 0
        %516 = vmatprep.subr.bf16.mxu0 0
        %517 = vmatpush1.bf16.msra.mxu0 0
        %518 = vmatprep.subr.bf16.mxu0 0
        %519 = vmatpush1.bf16.msra.mxu0 0
        %520 = vmatprep.subr.bf16.mxu0 0
        %521 = vmatpush1.bf16.msra.mxu0 0
        %522 = vmatprep.subr.bf16.mxu0 0
        %523 = vmatpush1.bf16.msra.mxu0 0
        %524 = vmatprep.subr.bf16.mxu0 0
        %525 = vmatpush1.bf16.msra.mxu0 0
        %526 = vmatprep.mubr.bf16.mxu0 0
        %527 = vmatmul.mubr.bf16.gmra.mrb[0].mxu0 %v492
        %v528 = vpop.f32.mrb[0].mxu0
        %v529 = vadd.f32 %v489, %v528
        %v530 = vpop.f32.mrb[0].mxu0
        %v531 = vpop.f32.mrb[0].mxu0
        %v532 = vpop.f32.mrb[0].mxu0
        %533 = vdwg.mxu0
        %v534 = vmax.f32 %v529, 0.0
        %v536 = vsel %vm477, %v483, 0
        %538 = vmatprep.subr.bf16.mxu0 0
        %539 = vmatpush1.bf16.msra.mxu0 %v484
        %540 = vmatprep.subr.bf16.mxu0 0
        %541 = vmatpush1.bf16.msra.mxu0 0
        %542 = vmatprep.subr.bf16.mxu0 0
        %543 = vmatpush1.bf16.msra.mxu0 0
        %544 = vmatprep.subr.bf16.mxu0 0
        %545 = vmatpush1.bf16.msra.mxu0 0
        %546 = vmatprep.subr.bf16.mxu0 0
        %547 = vmatpush1.bf16.msra.mxu0 0
        %548 = vmatprep.subr.bf16.mxu0 0
        %549 = vmatpush1.bf16.msra.mxu0 0
        %550 = vmatprep.subr.bf16.mxu0 0
        %551 = vmatpush1.bf16.msra.mxu0 0
        %552 = vmatprep.subr.bf16.mxu0 0
        %553 = vmatpush1.bf16.msra.mxu0 0
        %554 = vmatprep.subr.bf16.mxu0 0
        %555 = vmatpush1.bf16.msra.mxu0 0
        %556 = vmatprep.subr.bf16.mxu0 0
        %557 = vmatpush1.bf16.msra.mxu0 0
        %558 = vmatprep.subr.bf16.mxu0 0
        %559 = vmatpush1.bf16.msra.mxu0 0
        %560 = vmatprep.subr.bf16.mxu0 0
        %561 = vmatpush1.bf16.msra.mxu0 0
        %562 = vmatprep.subr.bf16.mxu0 0
        %563 = vmatpush1.bf16.msra.mxu0 0
        %564 = vmatprep.subr.bf16.mxu0 0
        %565 = vmatpush1.bf16.msra.mxu0 0
        %566 = vmatprep.subr.bf16.mxu0 0
        %567 = vmatpush1.bf16.msra.mxu0 0
        %568 = vmatprep.subr.bf16.mxu0 0
        %569 = vmatpush1.bf16.msra.mxu0 0
        %570 = vmatprep.mubr.bf16.mxu0 0
        %571 = vmatmul.mubr.bf16.gmra.mrb[0].mxu0 %v536
        %v572 = vpop.f32.mrb[0].mxu0
        %v573 = vadd.f32 %v534, %v572
        %v574 = vpop.f32.mrb[0].mxu0
        %v575 = vpop.f32.mrb[0].mxu0
        %v576 = vpop.f32.mrb[0].mxu0
        %577 = vdwg.mxu0
        %578 = vst.msk [vmem:[%s269] sm:$0xff] %vm477, %v573
        %s579 = sand.u32 %s181, 1
        %s580 = scalar_lea.sflag [#allocation3], %s579
        %s581 = sand.u32 %s181, 1
        %s582 = smul.addr %s581, 8
        %s583 = scalar_lea.vmem [#allocation2], %s582
        // Predicated region
        $region49: #{tpu_custom_call.1} parent=47 // pred_check
          %p584 = pneg %p191
        $region50: #{tpu_custom_call.1} parent=47 // pred_check_branch
          %586 = sbr.rel (%p584) target = $region52
        $region51: #{tpu_custom_call.1} parent=47 // pred_region
          %s588 = ssub.s32 128, 128
          %589 = vsyncadd %s580, %s588
          %s590 = smul.addr %s21, 128
          %s591 = scalar_lea.hbm %s7, %s590
          %s593 = sshll.u32 %s583, 4
          %s594 = int_to_ptr.vmem [resolvable:$true] %s593
          %596 = dma.vmem_to_hbm [thread:$0]  %s594, 128, %s591, %s580
        $region52: #{tpu_custom_call.1} parent=47 // pred_fallthru
          _
      $region48: #{tpu_custom_call.1} parent=5 // pred_fallthru
        _
      %p597 = scmp.le.s32.totalorder 2, %s16
      // Predicated region
      $region53: #{tpu_custom_call.1} parent=5 // pred_check
        %p598 = pneg %p597
      $region54: #{tpu_custom_call.1} parent=5 // pred_check_branch
        %600 = sbr.rel (%p598) target = $region56
      $region55: #{tpu_custom_call.1} parent=5 // pred_region
        %s601 = ssub.s32 %s16, 2
        // Predicated region
        $region57: #{tpu_custom_call.1} parent=55 // pred_check
          %p602 = pneg %p197
        $region58: #{tpu_custom_call.1} parent=55 // pred_check_branch
          %604 = sbr.rel (%p602) target = $region60
        $region59: #{tpu_custom_call.1} parent=55 // pred_region
          %s605 = sand.u32 %s182, 1
          %s606 = scalar_lea.sflag [#allocation3], %s605
          %s607 = sand.u32 %s182, 1
          %s608 = smul.addr %s607, 8
          %s609 = scalar_lea.vmem [#allocation2], %s608
          %610 = dma.done %s606, 128
        $region60: #{tpu_custom_call.1} parent=55 // pred_fallthru
          _
      $region56: #{tpu_custom_call.1} parent=5 // pred_fallthru
        _
    $region6: #{tpu_custom_call.1} parent=1 // loop_footer
      %s20 = sadd.s32 1, %s16
    $region7: #{tpu_custom_call.1} parent=1 // loop_footer_branch
      %15 = sbr.rel target = $region3
    $region8: #{tpu_custom_call.1} parent=1 // loop_exit
      _
    %611 = vsyncpa [#allocation3], 1
    %s612 = scalar_lea.sflag [#allocation3], 1
    %613 = vsyncpa %s612, 1

</llo_original>
